<compile_context>
chip_gen: v6e
topology: v6e:2x2x1
jax: 0.10.0
libtpu: 0.0.40
codegen_flags: <defaults>
</compile_context>

<pallas_src>
import functools

import jax
import jax.numpy as jnp
from jax.experimental import pallas as pl
from jax.experimental.pallas import tpu as pltpu


# ---------------------------------------------------------------------------
# Kernel
# ---------------------------------------------------------------------------
def _advdiff_kernel(u_ref, *refs, inv_dx2, inv_2dx, n_valid, has_ccoeff):
    if has_ccoeff:
        d_ref, c_ref, o_ref = refs
    else:
        d_ref, o_ref = refs

    u = u_ref[...]                                    # (TB, Np) f32, Np % 128 == 0
    Np = u.shape[-1]

    # Column index (1, Np): boundary masks for the zero-padded stencil.
    col = jax.lax.broadcasted_iota(jnp.int32, (1, Np), dimension=1)
    zero = jnp.zeros((), u.dtype)

    # u_left[i]  = u[i-1], zero at i == 0             (XLU roll + lane mask)
    u_left = jnp.where(col == 0, zero, pltpu.roll(u, shift=1, axis=1))
    # u_right[i] = u[i+1], zero at i == n_valid - 1   (pad lanes already zero)
    u_right = jnp.where(col == n_valid - 1, zero,
                        pltpu.roll(u, shift=Np - 1, axis=1))

    # conv1d([1,-2,1]) cross-correlation (discrete Laplacian).
    y_xx = u_left - 2.0 * u + u_right
    res = (d_ref[...] * y_xx) * inv_dx2

    if has_ccoeff:
        # conv1d([-1,0,1]) cross-correlation (central difference).
        y_x = u_right - u_left
        res = res - (c_ref[...] * y_x) * inv_2dx

    o_ref[...] = res.astype(o_ref.dtype)


# ---------------------------------------------------------------------------
# Tiling helpers (generation aware)
# ---------------------------------------------------------------------------
def _vmem_capacity_bytes():
    try:
        return int(pltpu.get_tpu_info().vmem_capacity_bytes)
    except Exception:
        return 64 * 1024 * 1024          # v7x per-core VMEM; safe lower bound


def _choose_batch_tile(B, Np, n_planes):
    """Largest batch tile whose double-buffered working set
    (n_planes x tile x 2 buffers, f32) fits ~40% of this generation's VMEM,
    capped so the grid has >= 2 steps (keeps both v7x TensorCores busy)."""
    budget = int(0.4 * _vmem_capacity_bytes())
    bytes_per_row = n_planes * Np * 4 * 2            # f32 planes x 2 buffers
    tb = max(1, budget // bytes_per_row)
    if B >= 16:
        tb = min(tb, pl.cdiv(B, 2))                  # >= 2 grid steps
    if tb >= B:
        return B                                     # single full-batch block
    return max(8, (tb // 8) * 8)                     # sublane-aligned tile


# ---------------------------------------------------------------------------
# Forward (hot path)
# ---------------------------------------------------------------------------
def _advdiff_forward(u, dcoeff, ccoeff, *, dx, n_valid, tb, vmem_limit):
    B = u.shape[0]
    Np = dcoeff.shape[-1]

    u = u.astype(jnp.float32)
    if Np != n_valid:
        # Only when N % 128 != 0 (pltpu.roll wants a 128-aligned lane width).
        u = jnp.pad(u, ((0, 0), (0, Np - n_valid)))

    has_ccoeff = ccoeff is not None
    n_coeff = 2 if has_ccoeff else 1

    kernel = functools.partial(
        _advdiff_kernel,
        inv_dx2=1.0 / (dx * dx),
        inv_2dx=1.0 / (2.0 * dx),
        n_valid=n_valid,
        has_ccoeff=has_ccoeff,
    )

    grid = (pl.cdiv(B, tb),)
    # Note: when B % tb != 0 the trailing block reads out-of-bounds rows; rows
    # are independent and OOB writes are dropped, so this is harmless.
    mk_spec = lambda: pl.BlockSpec((tb, Np), lambda i: (i, 0))
    in_specs = [mk_spec(), mk_spec()] + ([mk_spec()] if has_ccoeff else [])
    operands = (u, dcoeff) + ((ccoeff,) if has_ccoeff else ())

    cost = pl.CostEstimate(
        flops=(10 if has_ccoeff else 7) * B * n_valid,
        transcendentals=0,
        bytes_accessed=(2 + n_coeff) * B * Np * 4,
    )

    out = pl.pallas_call(
        kernel,
        out_shape=jax.ShapeDtypeStruct((B, Np), jnp.float32),
        grid_spec=pltpu.PrefetchScalarGridSpec(
            num_scalar_prefetch=0,
            grid=grid,
            in_specs=in_specs,
            out_specs=pl.BlockSpec((tb, Np), lambda i: (i, 0)),
        ),
        compiler_params=pltpu.CompilerParams(
            dimension_semantics=("parallel",),
            vmem_limit_bytes=vmem_limit,
        ),
        cost_estimate=cost,
    )(*operands)

    return out[:, :n_valid] if Np != n_valid else out


# ---------------------------------------------------------------------------
# Module wrapper (mirrors the PyTorch nn.Module)
# ---------------------------------------------------------------------------
class AdvDiffDynamics:
    """Pallas/TPU port of AdvDiffDynamics.

    params: (B, N, P) per-grid-point coefficients (column 0 = dcoeff,
    column -1 = ccoeff when P > 1) -- the layout under which the PyTorch
    module's `params[:, 0].view(-1, 1).view_as(y_xx)` is well defined.
    """

    def __init__(self, params, dx):
        params = jnp.asarray(params, dtype=jnp.float32)
        if params.ndim != 3:
            raise ValueError("expected params of shape (B, N, P)")
        B, N, P = params.shape
        self.dx = float(dx)
        self.B, self.N = B, N
        self.has_ccoeff = P > 1

        # Planar, lane-padded coefficient planes -- computed ONCE, outside the
        # per-timestep hot path (they are constant across dynamics steps).
        Np = N if N % 128 == 0 else ((N + 127) // 128) * 128
        self.Np = Np
        pad = ((0, 0), (0, Np - N))
        d = params[..., 0]
        self.dcoeff = jnp.pad(d, pad) if Np != N else d
        if self.has_ccoeff:
            c = params[..., P - 1]
            self.ccoeff = jnp.pad(c, pad) if Np != N else c
        else:
            self.ccoeff = None

        n_coeff = 2 if self.has_ccoeff else 1
        n_planes = 2 + n_coeff                       # u + out + coeff planes
        self._tb = _choose_batch_tile(B, Np, n_planes)

        # Scoped-VMEM limit: cover the real pipelined footprint with headroom,
        # but stay well inside this generation's physical VMEM.
        footprint = n_planes * self._tb * Np * 4 * 2
        physical = _vmem_capacity_bytes()
        self._vmem_limit = int(min(0.75 * physical,
                                   max(32 * 1024 * 1024, 2 * footprint)))

        self._forward = jax.jit(functools.partial(
            _advdiff_forward,
            dx=self.dx, n_valid=N, tb=self._tb, vmem_limit=self._vmem_limit))

    def forward(self, t, init_conds):
        del t  # dynamics are autonomous
        u = jnp.asarray(init_conds)
        if u.shape != (self.B, self.N):
            raise ValueError(f"expected init_conds of shape {(self.B, self.N)}")
        return self._forward(u, self.dcoeff, self.ccoeff)

    def __call__(self, t, init_conds):
        return self.forward(t, init_conds)


# ---------------------------------------------------------------------------
# Pure-JAX reference (mirror of the PyTorch forward) and self-test
# ---------------------------------------------------------------------------
def _reference(init_conds, params, dx):
    u = init_conds
    B, N = u.shape
    P = params.shape[-1]
    up = jnp.pad(u, ((0, 0), (1, 1)))
    u_left, u_right = up[:, :-2], up[:, 2:]
    y_xx = u_left - 2.0 * u + u_right
    d = params.reshape(B, N, P)[..., 0]
    res = d * y_xx / dx / dx
    if P > 1:
        c = params.reshape(B, N, P)[..., -1]
        y_x = u_right - u_left
        res = res - c * y_x / 2.0 / dx
    return res


if __name__ == "__main__":
    key = jax.random.PRNGKey(0)
    k1, k2, k3 = jax.random.split(key, 3)
    dx = 0.1

    # Case 1: advection-diffusion (P == 2), N not a multiple of 128.
    B, N, P = 2, 16, 2
    init_conds = jax.random.normal(k1, (B, N), dtype=jnp.float32)
    params = 0.5 + 0.1 * jax.random.normal(k2, (B, N, P), dtype=jnp.float32)
    model = AdvDiffDynamics(params, dx)
    out = jax.block_until_ready(model(0.0, init_conds))
    ref = _reference(init_conds, params, dx)
    assert out.shape == (B, N) and out.dtype == jnp.float32
    assert jnp.allclose(out, ref, atol=1e-5, rtol=1e-5), "mismatch (P=2)"

    # Case 2: diffusion only (P == 1) -> no ccoeff plane is ever built / DMA'd.
    model1 = AdvDiffDynamics(params[..., :1], dx)
    out1 = jax.block_until_ready(model1(0.0, init_conds))
    ref1 = _reference(init_conds, params[..., :1], dx)
    assert jnp.allclose(out1, ref1, atol=1e-5, rtol=1e-5), "mismatch (P=1)"

    # Case 3: lane-aligned N -> hot path has zero padding / slicing passes.
    B2, N2 = 4, 128
    ic2 = jax.random.normal(k3, (B2, N2), dtype=jnp.float32)
    p2 = 0.5 + 0.1 * jax.random.normal(k2, (B2, N2, 2), dtype=jnp.float32)
    model2 = AdvDiffDynamics(p2, dx)
    out2 = jax.block_until_ready(model2(0.0, ic2))
    ref2 = _reference(ic2, p2, dx)
    assert out2.shape == (B2, N2)
    assert jnp.allclose(out2, ref2, atol=1e-5, rtol=1e-5), "mismatch (aligned N)"

    print("KERNEL_OK")
</pallas_src>

<mosaic_0001>
module attributes {stable_mosaic.version = 11 : i64} {
  func.func @_advdiff_kernel(%arg0: i32, %arg1: memref<2x128xf32, #tpu.memory_space<vmem>>, %arg2: memref<2x128xf32, #tpu.memory_space<vmem>>, %arg3: memref<2x128xf32, #tpu.memory_space<vmem>>, %arg4: memref<2x128xf32, #tpu.memory_space<vmem>>) attributes {dimension_semantics = [#tpu.dimension_semantics<parallel>], iteration_bounds = array<i64: 1>, scalar_prefetch = 0 : i64, scratch_operands = 0 : i64, tpu.core_type = #tpu.core_type<tc>, window_params = [{transform_indices = @transform_0, window_bounds = array<i64: 2, 128>}, {transform_indices = @transform_1, window_bounds = array<i64: 2, 128>}, {transform_indices = @transform_2, window_bounds = array<i64: 2, 128>}, {transform_indices = @transform_3, window_bounds = array<i64: 2, 128>}]} {
    %c0 = arith.constant 0 : index
    %c0_0 = arith.constant 0 : index
    %0 = vector.load %arg1[%c0, %c0_0] : memref<2x128xf32, #tpu.memory_space<vmem>>, vector<2x128xf32>
    %1 = tpu.iota {dimensions = array<i32: 1>} : vector<1x128xi32>
    %c0_i32 = arith.constant 0 : i32
    %2 = vector.broadcast %c0_i32 : i32 to vector<1x128xi32>
    %3 = arith.cmpi eq, %1, %2 : vector<1x128xi32>
    %c1_i32 = arith.constant 1 : i32
    %4 = tpu.dynamic_rotate %0 by %c1_i32 dim 1 : vector<2x128xf32>, i32 -> vector<2x128xf32>
    %cst = arith.constant 0.000000e+00 : f32
    %5 = vector.shape_cast %3 : vector<1x128xi1> to vector<1x128xi1>
    %6 = vector.broadcast %5 : vector<1x128xi1> to vector<2x128xi1>
    %7 = vector.broadcast %cst : f32 to vector<2x128xf32>
    %8 = arith.select %6, %7, %4 : vector<2x128xi1>, vector<2x128xf32>
    %c15_i32 = arith.constant 15 : i32
    %9 = vector.broadcast %c15_i32 : i32 to vector<1x128xi32>
    %10 = arith.cmpi eq, %1, %9 : vector<1x128xi32>
    %c127_i32 = arith.constant 127 : i32
    %11 = tpu.dynamic_rotate %0 by %c127_i32 dim 1 : vector<2x128xf32>, i32 -> vector<2x128xf32>
    %cst_1 = arith.constant 0.000000e+00 : f32
    %12 = vector.shape_cast %10 : vector<1x128xi1> to vector<1x128xi1>
    %13 = vector.broadcast %12 : vector<1x128xi1> to vector<2x128xi1>
    %14 = vector.broadcast %cst_1 : f32 to vector<2x128xf32>
    %15 = arith.select %13, %14, %11 : vector<2x128xi1>, vector<2x128xf32>
    %cst_2 = arith.constant 2.000000e+00 : f32
    %16 = vector.broadcast %cst_2 : f32 to vector<2x128xf32>
    %17 = arith.mulf %16, %0 : vector<2x128xf32>
    %18 = arith.subf %8, %17 : vector<2x128xf32>
    %19 = arith.addf %18, %15 : vector<2x128xf32>
    %c0_3 = arith.constant 0 : index
    %c0_4 = arith.constant 0 : index
    %20 = vector.load %arg2[%c0_3, %c0_4] : memref<2x128xf32, #tpu.memory_space<vmem>>, vector<2x128xf32>
    %21 = arith.mulf %20, %19 : vector<2x128xf32>
    %cst_5 = arith.constant 1.000000e+02 : f32
    %22 = vector.broadcast %cst_5 : f32 to vector<2x128xf32>
    %23 = arith.mulf %21, %22 : vector<2x128xf32>
    %24 = arith.subf %15, %8 : vector<2x128xf32>
    %c0_6 = arith.constant 0 : index
    %c0_7 = arith.constant 0 : index
    %25 = vector.load %arg3[%c0_6, %c0_7] : memref<2x128xf32, #tpu.memory_space<vmem>>, vector<2x128xf32>
    %26 = arith.mulf %25, %24 : vector<2x128xf32>
    %cst_8 = arith.constant 5.000000e+00 : f32
    %27 = vector.broadcast %cst_8 : f32 to vector<2x128xf32>
    %28 = arith.mulf %26, %27 : vector<2x128xf32>
    %29 = arith.subf %23, %28 : vector<2x128xf32>
    %c0_9 = arith.constant 0 : index
    %c0_10 = arith.constant 0 : index
    %30 = vector.load %arg4[%c0_9, %c0_10] : memref<2x128xf32, #tpu.memory_space<vmem>>, vector<2x128xf32>
    tpu.vector_store %arg4[%c0_9, %c0_10], %29 {strides = array<i32>} : memref<2x128xf32, #tpu.memory_space<vmem>>, vector<2x128xf32>,
    return
  }
  func.func @transform_0(%arg0: i32) -> (i32, i32) {
    %c0_i32 = arith.constant 0 : i32
    %c0_i32_0 = arith.constant 0 : i32
    return %arg0, %c0_i32 : i32, i32
  }
  func.func @transform_1(%arg0: i32) -> (i32, i32) {
    %c0_i32 = arith.constant 0 : i32
    %c0_i32_0 = arith.constant 0 : i32
    return %arg0, %c0_i32 : i32, i32
  }
  func.func @transform_2(%arg0: i32) -> (i32, i32) {
    %c0_i32 = arith.constant 0 : i32
    %c0_i32_0 = arith.constant 0 : i32
    return %arg0, %c0_i32 : i32, i32
  }
  func.func @transform_3(%arg0: i32) -> (i32, i32) {
    %c0_i32 = arith.constant 0 : i32
    %c0_i32_0 = arith.constant 0 : i32
    return %arg0, %c0_i32 : i32, i32
  }
}

</mosaic_0001>

<llo_original>
// kernel: _advdiff_forward.1
$region0: #{_advdiff_forward.1}
  #allocation0 [shape = 'u32[]', space=smem, size = 0x4, offset = 0x4, fixed_abs, tag = 'smem constant byte address 0x4 - core index']
  #allocation1 [shape = 'u32[144,128]{1,0:T(1,128)}', space=vmem, size = 0x12000, scoped, tag = 'internal scratch']
  %s0 = inlined_call_operand.vmem [shape: f32[2,128], index: 0, kind: input, shape index: {}]
  %s1 = inlined_call_operand.vmem [shape: f32[2,128], index: 1, kind: input, shape index: {}]
  %s2 = inlined_call_operand.vmem [shape: f32[2,128], index: 2, kind: input, shape index: {}]
  %s3 = inlined_call_operand.hbm [shape: f32[2,128], index: 3, kind: output, shape index: {}]
  %s4 = sld [smem:[#allocation0]]
  $region22: #{_advdiff_forward.1} parent=0
    _
  %s6 = ssub.s32 1, %s4
  %s7 = scalar_select 0, %s6, %s4
  $region1: #{_advdiff_forward.1} parent=0
    #allocation2 [shape = 'u8[1024]{0}', space=vmem, size = 0x400, scoped, tag = 'output window, operand 0, single buffered']
    #allocation3 [shape = 's32[1]{0}', space=sflag, size = 0x4, scoped, tag = 'scoped memory for _advdiff_forward.1']
    %8 = vsyncpa [#allocation3], 0
    // Predicated region
    $region2: #{_advdiff_forward.1} parent=1 // pred_check
      _
    $region3: #{_advdiff_forward.1} parent=1 // pred_check_branch
      %10 = sbr.rel (0) target = $region5
    $region4: #{_advdiff_forward.1} parent=1 // pred_region
      _
    $region5: #{_advdiff_forward.1} parent=1 // pred_fallthru
      _
    // Predicated region
    $region6: #{_advdiff_forward.1} parent=1 // pred_check
      _
    $region7: #{_advdiff_forward.1} parent=1 // pred_check_branch
      %12 = sbr.rel (0) target = $region9
    $region8: #{_advdiff_forward.1} parent=1 // pred_region
      _
    $region9: #{_advdiff_forward.1} parent=1 // pred_fallthru
      _
    // Predicated region
    $region10: #{_advdiff_forward.1} parent=1 // pred_check
      _
    $region11: #{_advdiff_forward.1} parent=1 // pred_check_branch
      %14 = sbr.rel (0) target = $region13
    $region12: #{_advdiff_forward.1} parent=1 // pred_region
      _
    $region13: #{_advdiff_forward.1} parent=1 // pred_fallthru
      _
    %v15 = vld [vmem:[%s0] sm:$0x3]
    %v16 = vlaneseq
    %v17 = vand.u32 %v16, 127
    %vm18 = vcmp.eq.s32.totalorder %v17, 0
    %19 = vrot.lane.b32.xlu0 %v15, 1
    %v20 = vpop.permute.xlu0 %19
    %v21 = vsel %vm18, 1, 0
    %vm22 = vcmp.eq.s32.totalorder %v21, 1
    %v23 = vsel %vm22, 0.0, %v20
    %vm24 = vcmp.eq.s32.totalorder %v17, 15
    %25 = vrot.lane.b32.xlu0 %v15, 127
    %v26 = vpop.permute.xlu0 %25
    %v27 = vsel %vm24, 1, 0
    %vm28 = vcmp.eq.s32.totalorder %v27, 1
    %v29 = vsel %vm28, 0.0, %v26
    %v30 = vmul.f32 %v15, 2.0
    %v31 = vsub.f32 %v23, %v30
    %v32 = vadd.f32 %v31, %v29
    %v33 = vld [vmem:[%s1] sm:$0x3]
    %v34 = vmul.f32 %v33, %v32
    %v35 = vmul.f32 %v34, 100.0
    %v36 = vsub.f32 %v29, %v23
    %v37 = vld [vmem:[%s2] sm:$0x3]
    %v38 = vmul.f32 %v37, %v36
    %v39 = vmul.f32 %v38, 5.0
    %v40 = vsub.f32 %v35, %v39
    %41 = vst [vmem:[#allocation2] sm:$0x3] %v40
    // Predicated region
    $region14: #{_advdiff_forward.1} parent=1 // pred_check
      _
    $region15: #{_advdiff_forward.1} parent=1 // pred_check_branch
      %43 = sbr.rel (0) target = $region17
    $region16: #{_advdiff_forward.1} parent=1 // pred_region
      %s45 = ssub.s32 32, 32
      %46 = vsyncadd [#allocation3], %s45
      %s48 = sshll.u32 [#allocation2], 4
      %s49 = int_to_ptr.vmem [resolvable:$true] %s48
      %51 = dma.vmem_to_hbm [thread:$0]  %s49, 32, %s3, [#allocation3]
    $region17: #{_advdiff_forward.1} parent=1 // pred_fallthru
      _
    // Predicated region
    $region18: #{_advdiff_forward.1} parent=1 // pred_check
      _
    $region19: #{_advdiff_forward.1} parent=1 // pred_check_branch
      %53 = sbr.rel (0) target = $region21
    $region20: #{_advdiff_forward.1} parent=1 // pred_region
      %54 = dma.done [#allocation3], 32
    $region21: #{_advdiff_forward.1} parent=1 // pred_fallthru
      _
    %55 = vsyncpa [#allocation3], 1

</llo_original>
